<compile_context>
chip_gen: v6e
topology: v6e:2x2x1
jax: 0.10.0
libtpu: 0.0.40
codegen_flags: <defaults>
</compile_context>

<pallas_src>
import functools

import jax
import jax.numpy as jnp
import numpy as np
from jax.experimental import pallas as pl
from jax.experimental.pallas import tpu as pltpu


# ----------------------------------------------------------------------------
# Pallas kernel: decode one (1, C, TS) tile of raw logits into
# (1, 8, TS) boxes + (1, 1, TS) confidence mask.
# ----------------------------------------------------------------------------
def _decode_kernel(x_ref, pred_ref, mask_ref, *, H0, minY, minZ, zsize,
                   meandims, vaildconf):
    """Channel semantics (identical to the PyTorch module):
      0: sigmoid                      (confidence)
      1: sigmoid + grid_x             (x, bev cells)
      2: sigmoid + grid_y + minY      (y)
      3: sigmoid * zsize + minZ       (z)
      4..6: exp * meandims[k]         (dims)
      7: atan2(tanh(ch7), tanh(ch8))  (yaw)
    plus mask = sigmoid(ch0) > vaildconf.
    """
    TS = x_ref.shape[-1]
    f32 = jnp.float32

    # --- transcendentals on grouped sublane blocks. bf16 inputs are widened
    # here so only half-width bytes cross HBM.
    sig = jax.nn.sigmoid(x_ref[0, 0:4, :].astype(f32))    # (4, TS)
    expd = jnp.exp(x_ref[0, 4:7, :].astype(f32))          # (3, TS)
    # With C=9 the f32 VMEM tile is (8,128): rows 7..8 straddle the sublane
    # tile boundary, so read them as two non-straddling (1, TS) slices.
    t7 = jnp.tanh(x_ref[0, 7:8, :].astype(f32))           # (1, TS)
    t8 = jnp.tanh(x_ref[0, 8:9, :].astype(f32))           # (1, TS)

    # --- grid_x / grid_y without an integer divide --------------------------
    # Flattened spatial index s = i * H0 + j  ->  grid_x = i, grid_y = j.
    # floor((s + 0.5) * fl32(1/H0)) == s // H0 exactly while the ~1 ulp product
    # error stays below 0.5/H0 (asserted in the wrapper: S < 2^21).
    base_f = (pl.program_id(1) * TS).astype(f32)
    row4 = jax.lax.broadcasted_iota(jnp.int32, (4, TS), 0)
    idx = jax.lax.broadcasted_iota(jnp.int32, (4, TS), 1).astype(f32) + base_f
    gx = jnp.floor((idx + f32(0.5)) * f32(1.0 / H0))
    gy = idx - gx * f32(H0)

    # Per-sublane offset / scale for the four sigmoid channels.
    offs = jnp.where(row4 == 1, gx,
           jnp.where(row4 == 2, gy + f32(minY),
           jnp.where(row4 == 3, f32(minZ), f32(0.0))))
    scale = jnp.where(row4 == 3, f32(zsize), f32(1.0))

    # Per-sublane meandims scale built from scalar literals + an iota
    # (a jnp.array([...]) here would be a captured f32[3] constant, which
    # pallas_call rejects).
    row3 = jax.lax.broadcasted_iota(jnp.int32, (3, TS), 0)
    mscale = jnp.where(row3 == 0, f32(meandims[0]),
             jnp.where(row3 == 1, f32(meandims[1]), f32(meandims[2])))

    # --- grouped sub-slice stores (no sublane concatenate) -------------------
    out_dt = pred_ref.dtype
    pred_ref[0, 0:4, :] = (sig * scale + offs).astype(out_dt)
    pred_ref[0, 4:7, :] = (expd * mscale).astype(out_dt)
    pred_ref[0, 7:8, :] = jnp.arctan2(t7, t8).astype(out_dt)

    # Fused confidence mask: everything needed is already in vregs, the
    # compare is done at f32 (independent of pred_dtype), and the 1 B/elem
    # store replaces a separate XLA launch that re-read the conf channel.
    mask_ref[0, 0:1, :] = (sig[0:1, :] > f32(vaildconf)).astype(mask_ref.dtype)

    # NOTE(v7x): if profiling ever shows the EUP/VPU slot binding after the
    # bandwidth fixes, the sigmoid/tanh calls could be folded into one exp
    # pass over a full (8, TS) slab; skipped here — it is invisible filler
    # under HBM time on v5e/v6e.


# ----------------------------------------------------------------------------
# Tile-size choice for the flattened spatial axis.
# ----------------------------------------------------------------------------
def _choose_s_tile(S, B, target):
    """Lane-tile choice.

    * Caps the tile so the (B, spatial) grid has >= 4 parallel steps whenever
      possible: on v7x the two TensorCores shard 'parallel' grid axes, and a
      (1, 1) grid would leave one core idle.  v5e/v6e (1 TC) are unaffected.
    * Never falls back to a full-plane block when S is large and not a
      multiple of 128; a 128-multiple tile with a cdiv grid (ragged last
      block masked by Pallas) keeps the double-buffered working set bounded
      on every chip (v5e 16 MiB scoped VMEM, v7x 64 MiB physical).
    """
    occ_cap = -(-(B * S) // 4)                        # ceil(B*S / 4)
    occ_cap = max(128, ((occ_cap + 127) // 128) * 128)
    target = min(target, occ_cap)
    if S <= target:
        return S                                      # block dim == array dim
    best = None
    for cand in range(128, target + 1, 128):          # prefer exact division
        if S % cand == 0:
            best = cand
    if best is not None:
        return best
    return (target // 128) * 128                      # ragged last block


# ----------------------------------------------------------------------------
# Wrapper
# ----------------------------------------------------------------------------
def decoder_with_nms_decode(output_nchw, *, minY, minZ, zsize, meandims,
                            vaildconf, pred_dtype=jnp.float32,
                            s_tile_target=32768):
    """Pallas equivalent of the tensor part of DecoderWithNMS.forward.

    Args:
      output_nchw: (B, C, W0, H0) raw network output, C >= 9, f32 or bf16.
        NOTE: channels 9..C-1 (if any) are dead weight in the input DMA — the
        sublane block must cover all C rows — so the producing head should
        emit exactly 9 channels.  A wrapper-side slice would add a full extra
        HBM pass, so it is deliberately not done here.
      pred_dtype: dtype of the decoded boxes.  float32 (default) matches the
        PyTorch module; bfloat16 halves the write side of this HBM-bound
        kernel (~24% total traffic) but loses sub-cell precision on the x/y
        coordinate channels — only use it if the downstream NMS tolerates
        that.  The confidence mask is always computed at f32.
      s_tile_target: max lanes per grid step.  32768 keeps the double-buffered
        working set ~6 MiB, inside every chip's scoped-VMEM default (v5e:
        16 MiB, v6e/v7x: 32 MiB).  Raising it past ~65536 buys at most a few
        percent (the kernel already sits at the HBM roofline on v5e/v6e) and
        needs vmem_limit_bytes raised, which is handled below.

    Returns:
      pred: (B, 8, W0, H0) pred_dtype decoded boxes, channels-first:
            [conf, x, y, z, d0, d1, d2, ry].  The PyTorch NHWC permute is
            deferred to the host consumer (an extra device pass would be
            wasted on data the NMS reads host-side anyway).
      mask: (B, W0, H0) uint8 0/1, conf > vaildconf, written by the same
            kernel (no second launch, no re-read of the conf channel).
    """
    B, C, W0, H0 = output_nchw.shape
    if C < 9:
        raise ValueError(f"DecoderWithNMS decode needs >= 9 channels, got {C}")
    S = W0 * H0
    # floor((s+0.5)*fl32(1/H0)) == s//H0 needs the ~1 ulp product error to stay
    # below 0.5/H0, i.e. s < ~2^22; keep a 2x margin.
    assert S < (1 << 21), "grid_x float-floor trick requires W0*H0 < 2^21"

    x = output_nchw.reshape(B, C, S)      # metadata-only reshape
    TS = _choose_s_tile(S, B, s_tile_target)
    grid = (B, pl.cdiv(S, TS))

    kernel = functools.partial(
        _decode_kernel, H0=H0, minY=float(minY), minZ=float(minZ),
        zsize=float(zsize), meandims=tuple(float(m) for m in meandims),
        vaildconf=float(vaildconf))

    # Double-buffered VMEM working-set estimate (input sublanes pad to a
    # multiple of 8 for f32); only override the scoped-VMEM default when a
    # large tile actually needs it (keeps v5e's 16 MiB default happy).
    pred_bytes = np.dtype(pred_dtype).itemsize
    vmem_est = (2 * (((C + 7) // 8) * 8) * TS * 4      # input blocks
                + 2 * 8 * TS * max(pred_bytes, 4)      # pred blocks
                + 2 * 32 * TS)                         # uint8 mask blocks
    cp = dict(dimension_semantics=("parallel", "parallel"))
    if vmem_est > (12 << 20):
        cp["vmem_limit_bytes"] = int(min(vmem_est + (4 << 20), 64 << 20))

    pred, mask = pl.pallas_call(
        kernel,
        out_shape=(jax.ShapeDtypeStruct((B, 8, S), pred_dtype),
                   jax.ShapeDtypeStruct((B, 1, S), jnp.uint8)),
        grid=grid,
        in_specs=[pl.BlockSpec((1, C, TS), lambda b, s: (b, 0, s))],
        out_specs=(pl.BlockSpec((1, 8, TS), lambda b, s: (b, 0, s)),
                   pl.BlockSpec((1, 1, TS), lambda b, s: (b, 0, s))),
        compiler_params=pltpu.CompilerParams(**cp),
    )(x)

    pred = pred.reshape(B, 8, W0, H0)     # metadata-only
    mask = mask.reshape(B, W0, H0)

    # TODO(synk): the greedy IoU-3D NMS while-loop (data-dependent sequential
    # pruning), lidar_to_camera_box calibration, Object3d / compute_box_3d and
    # the KITTI txt writing are host-side numpy + file I/O with no Pallas
    # equivalent; they consume the few boxes selected by `mask` on the host.
    return pred, mask


# ----------------------------------------------------------------------------
# Pure-JAX reference (mirrors the PyTorch element-wise decode exactly, NHWC).
# ----------------------------------------------------------------------------
def _reference(output_nchw, *, minY, minZ, zsize, meandims, vaildconf):
    B, C, W0, H0 = output_nchw.shape
    o = jnp.transpose(output_nchw, (0, 2, 3, 1)).astype(jnp.float32)
    grid_x = jnp.broadcast_to(
        jnp.arange(W0, dtype=jnp.float32)[None, :, None], (B, W0, H0))
    grid_y = jnp.broadcast_to(
        jnp.arange(H0, dtype=jnp.float32)[None, None, :], (B, W0, H0))
    pred = jnp.stack([
        jax.nn.sigmoid(o[..., 0]),
        jax.nn.sigmoid(o[..., 1]) + grid_x,
        jax.nn.sigmoid(o[..., 2]) + grid_y + minY,
        jax.nn.sigmoid(o[..., 3]) * zsize + minZ,
        jnp.exp(o[..., 4]) * meandims[0],
        jnp.exp(o[..., 5]) * meandims[1],
        jnp.exp(o[..., 6]) * meandims[2],
        jnp.arctan2(jnp.tanh(o[..., 7]), jnp.tanh(o[..., 8])),
    ], axis=-1)
    mask = pred[..., 0] > vaildconf
    return pred, mask


# ----------------------------------------------------------------------------
# Main
# ----------------------------------------------------------------------------
if __name__ == "__main__":
    cfg = dict(
        minY=-40.0,
        minZ=-2.73,
        zsize=1.27 - (-2.73),          # cfg.maxZ - cfg.minZ
        meandims=(3.88, 1.63, 1.53),
        vaildconf=0.5,
    )

    # Host-side verification of the float-floor grid reconstruction for
    # several non-power-of-two H0 over the full supported index range scale.
    for H0_chk in (24, 30, 88, 152):
        s_idx = np.arange(1 << 20, dtype=np.int64)
        gx_chk = np.floor((s_idx.astype(np.float32) + np.float32(0.5))
                          * np.float32(1.0 / H0_chk)).astype(np.int64)
        assert np.array_equal(gx_chk, s_idx // H0_chk), \
            f"float-floor grid trick failed for H0={H0_chk}"

    key = jax.random.PRNGKey(0)
    # (B, C, W0, H0, pred_dtype): baseline / extra dead channels /
    # ragged (S not a multiple of 128, non-pow2 H0) / bf16 writes.
    test_cases = [
        (2, 9, 16, 16, jnp.float32),
        (2, 12, 16, 16, jnp.float32),
        (1, 9, 10, 30, jnp.float32),
        (2, 9, 16, 16, jnp.bfloat16),
    ]

    for (B, C, W0, H0, pdt) in test_cases:
        key, sub = jax.random.split(key)
        output = jax.random.normal(sub, (B, C, W0, H0), dtype=jnp.float32)

        pred, mask = decoder_with_nms_decode(output, pred_dtype=pdt, **cfg)
        pred = jax.block_until_ready(pred)
        mask = jax.block_until_ready(mask)

        pred_ref_nhwc, mask_ref = _reference(output, **cfg)

        assert pred.shape == (B, 8, W0, H0) and pred.dtype == pdt
        assert mask.shape == (B, W0, H0) and mask.dtype == jnp.uint8

        # Host-side permute of the kernel output (essentially free there) to
        # compare against the PyTorch NHWC convention.
        pred_nhwc = np.transpose(np.asarray(pred.astype(jnp.float32)),
                                 (0, 2, 3, 1))
        assert np.array_equal(np.asarray(mask).astype(bool),
                              np.asarray(mask_ref))
        if pdt == jnp.float32:
            tol = dict(rtol=1e-3, atol=1e-3)
        else:  # bf16 writes: ~8-bit mantissa; |y| ~ 40 -> atol dominated.
            tol = dict(rtol=8e-3, atol=0.25)
        assert np.allclose(pred_nhwc, np.asarray(pred_ref_nhwc), **tol)

    print("KERNEL_OK")
</pallas_src>

<mosaic_0001>
module attributes {stable_mosaic.version = 11 : i64} {
  func.func @_decode_kernel(%arg0: i32, %arg1: i32, %arg2: memref<1x9x128xf32, #tpu.memory_space<vmem>>, %arg3: memref<1x8x128xf32, #tpu.memory_space<vmem>>, %arg4: memref<1x1x128xi8, #tpu.memory_space<vmem>>) attributes {dimension_semantics = [#tpu.dimension_semantics<parallel>, #tpu.dimension_semantics<parallel>], iteration_bounds = array<i64: 2, 2>, scalar_prefetch = 0 : i64, scratch_operands = 0 : i64, tpu.core_type = #tpu.core_type<tc>, window_params = [{transform_indices = @transform_0, window_bounds = array<i64: 1, 9, 128>}, {transform_indices = @transform_1, window_bounds = array<i64: 1, 8, 128>}, {transform_indices = @transform_2, window_bounds = array<i64: 1, 1, 128>}]} {
    %c0 = arith.constant 0 : index
    %c0_0 = arith.constant 0 : index
    %c0_1 = arith.constant 0 : index
    %0 = vector.load %arg2[%c0, %c0_0, %c0_1] : memref<1x9x128xf32, #tpu.memory_space<vmem>>, vector<1x4x128xf32>
    %1 = vector.shape_cast %0 : vector<1x4x128xf32> to vector<4x128xf32>
    %2 = arith.negf %1 : vector<4x128xf32>
    %3 = math.exp %2 : vector<4x128xf32>
    %cst = arith.constant 1.000000e+00 : f32
    %4 = vector.broadcast %cst : f32 to vector<4x128xf32>
    %5 = arith.addf %4, %3 : vector<4x128xf32>
    %6 = arith.divf %4, %5 : vector<4x128xf32>
    %c0_2 = arith.constant 0 : index
    %c4 = arith.constant 4 : index
    %c0_3 = arith.constant 0 : index
    %7 = vector.load %arg2[%c0_2, %c4, %c0_3] : memref<1x9x128xf32, #tpu.memory_space<vmem>>, vector<1x3x128xf32>
    %8 = vector.shape_cast %7 : vector<1x3x128xf32> to vector<3x128xf32>
    %9 = math.exp %8 : vector<3x128xf32>
    %c0_4 = arith.constant 0 : index
    %c7 = arith.constant 7 : index
    %c0_5 = arith.constant 0 : index
    %10 = vector.load %arg2[%c0_4, %c7, %c0_5] : memref<1x9x128xf32, #tpu.memory_space<vmem>>, vector<1x1x128xf32>
    %11 = vector.shape_cast %10 : vector<1x1x128xf32> to vector<1x128xf32>
    %12 = math.tanh %11 : vector<1x128xf32>
    %c0_6 = arith.constant 0 : index
    %c8 = arith.constant 8 : index
    %c0_7 = arith.constant 0 : index
    %13 = vector.load %arg2[%c0_6, %c8, %c0_7] : memref<1x9x128xf32, #tpu.memory_space<vmem>>, vector<1x1x128xf32>
    %14 = vector.shape_cast %13 : vector<1x1x128xf32> to vector<1x128xf32>
    %15 = math.tanh %14 : vector<1x128xf32>
    %c128_i32 = arith.constant 128 : i32
    %16 = arith.muli %arg1, %c128_i32 : i32
    %17 = arith.sitofp %16 : i32 to f32
    %18 = tpu.iota {dimensions = array<i32: 0>} : vector<4x128xi32>
    %19 = tpu.iota {dimensions = array<i32: 1>} : vector<4x128xi32>
    %20 = arith.sitofp %19 : vector<4x128xi32> to vector<4x128xf32>
    %21 = vector.broadcast %17 : f32 to vector<4x128xf32>
    %22 = arith.addf %20, %21 : vector<4x128xf32>
    %cst_8 = arith.constant 5.000000e-01 : f32
    %23 = vector.broadcast %cst_8 : f32 to vector<4x128xf32>
    %24 = arith.addf %22, %23 : vector<4x128xf32>
    %cst_9 = arith.constant 6.250000e-02 : f32
    %25 = vector.broadcast %cst_9 : f32 to vector<4x128xf32>
    %26 = arith.mulf %24, %25 : vector<4x128xf32>
    %27 = math.floor %26 : vector<4x128xf32>
    %cst_10 = arith.constant 1.600000e+01 : f32
    %28 = vector.broadcast %cst_10 : f32 to vector<4x128xf32>
    %29 = arith.mulf %27, %28 : vector<4x128xf32>
    %30 = arith.subf %22, %29 : vector<4x128xf32>
    %c1_i32 = arith.constant 1 : i32
    %31 = vector.broadcast %c1_i32 : i32 to vector<4x128xi32>
    %32 = arith.cmpi eq, %18, %31 : vector<4x128xi32>
    %c2_i32 = arith.constant 2 : i32
    %33 = vector.broadcast %c2_i32 : i32 to vector<4x128xi32>
    %34 = arith.cmpi eq, %18, %33 : vector<4x128xi32>
    %cst_11 = arith.constant -4.000000e+01 : f32
    %35 = vector.broadcast %cst_11 : f32 to vector<4x128xf32>
    %36 = arith.addf %30, %35 : vector<4x128xf32>
    %c3_i32 = arith.constant 3 : i32
    %37 = vector.broadcast %c3_i32 : i32 to vector<4x128xi32>
    %38 = arith.cmpi eq, %18, %37 : vector<4x128xi32>
    %cst_12 = arith.constant -2.730000e+00 : f32
    %cst_13 = arith.constant 0.000000e+00 : f32
    %39 = vector.broadcast %cst_12 : f32 to vector<4x128xf32>
    %40 = vector.broadcast %cst_13 : f32 to vector<4x128xf32>
    %41 = arith.select %38, %39, %40 : vector<4x128xi1>, vector<4x128xf32>
    %42 = arith.select %34, %36, %41 : vector<4x128xi1>, vector<4x128xf32>
    %43 = arith.select %32, %27, %42 : vector<4x128xi1>, vector<4x128xf32>
    %c3_i32_14 = arith.constant 3 : i32
    %44 = vector.broadcast %c3_i32_14 : i32 to vector<4x128xi32>
    %45 = arith.cmpi eq, %18, %44 : vector<4x128xi32>
    %cst_15 = arith.constant 4.000000e+00 : f32
    %cst_16 = arith.constant 1.000000e+00 : f32
    %46 = vector.broadcast %cst_15 : f32 to vector<4x128xf32>
    %47 = vector.broadcast %cst_16 : f32 to vector<4x128xf32>
    %48 = arith.select %45, %46, %47 : vector<4x128xi1>, vector<4x128xf32>
    %49 = tpu.iota {dimensions = array<i32: 0>} : vector<3x128xi32>
    %c0_i32 = arith.constant 0 : i32
    %50 = vector.broadcast %c0_i32 : i32 to vector<3x128xi32>
    %51 = arith.cmpi eq, %49, %50 : vector<3x128xi32>
    %c1_i32_17 = arith.constant 1 : i32
    %52 = vector.broadcast %c1_i32_17 : i32 to vector<3x128xi32>
    %53 = arith.cmpi eq, %49, %52 : vector<3x128xi32>
    %cst_18 = arith.constant 1.630000e+00 : f32
    %cst_19 = arith.constant 1.530000e+00 : f32
    %54 = vector.broadcast %cst_18 : f32 to vector<3x128xf32>
    %55 = vector.broadcast %cst_19 : f32 to vector<3x128xf32>
    %56 = arith.select %53, %54, %55 : vector<3x128xi1>, vector<3x128xf32>
    %cst_20 = arith.constant 3.880000e+00 : f32
    %57 = vector.broadcast %cst_20 : f32 to vector<3x128xf32>
    %58 = arith.select %51, %57, %56 : vector<3x128xi1>, vector<3x128xf32>
    %59 = arith.mulf %6, %48 : vector<4x128xf32>
    %60 = arith.addf %59, %43 : vector<4x128xf32>
    %c0_21 = arith.constant 0 : index
    %c0_22 = arith.constant 0 : index
    %c0_23 = arith.constant 0 : index
    %61 = vector.load %arg3[%c0_21, %c0_22, %c0_23] : memref<1x8x128xf32, #tpu.memory_space<vmem>>, vector<1x4x128xf32>
    %62 = vector.shape_cast %61 : vector<1x4x128xf32> to vector<4x128xf32>
    %63 = vector.shape_cast %60 : vector<4x128xf32> to vector<1x4x128xf32>
    tpu.vector_store %arg3[%c0_21, %c0_22, %c0_23], %63 {strides = array<i32>} : memref<1x8x128xf32, #tpu.memory_space<vmem>>, vector<1x4x128xf32>,
    %64 = arith.mulf %9, %58 : vector<3x128xf32>
    %c0_24 = arith.constant 0 : index
    %c4_25 = arith.constant 4 : index
    %c0_26 = arith.constant 0 : index
    %65 = vector.load %arg3[%c0_24, %c4_25, %c0_26] : memref<1x8x128xf32, #tpu.memory_space<vmem>>, vector<1x3x128xf32>
    %66 = vector.shape_cast %65 : vector<1x3x128xf32> to vector<3x128xf32>
    %67 = vector.shape_cast %64 : vector<3x128xf32> to vector<1x3x128xf32>
    tpu.vector_store %arg3[%c0_24, %c4_25, %c0_26], %67 {strides = array<i32>} : memref<1x8x128xf32, #tpu.memory_space<vmem>>, vector<1x3x128xf32>,
    %68 = math.atan2 %12, %15 : vector<1x128xf32>
    %c0_27 = arith.constant 0 : index
    %c7_28 = arith.constant 7 : index
    %c0_29 = arith.constant 0 : index
    %69 = vector.load %arg3[%c0_27, %c7_28, %c0_29] : memref<1x8x128xf32, #tpu.memory_space<vmem>>, vector<1x1x128xf32>
    %70 = vector.shape_cast %69 : vector<1x1x128xf32> to vector<1x128xf32>
    %71 = vector.shape_cast %68 : vector<1x128xf32> to vector<1x1x128xf32>
    tpu.vector_store %arg3[%c0_27, %c7_28, %c0_29], %71 {strides = array<i32>} : memref<1x8x128xf32, #tpu.memory_space<vmem>>, vector<1x1x128xf32>,
    %72 = vector.extract_strided_slice %6 {offsets = [0, 0], sizes = [1, 128], strides = [1, 1]} : vector<4x128xf32> to vector<1x128xf32>
    %cst_30 = arith.constant 5.000000e-01 : f32
    %73 = vector.broadcast %cst_30 : f32 to vector<1x128xf32>
    %74 = arith.cmpf ogt, %72, %73 : vector<1x128xf32>
    %75 = arith.extui %74 : vector<1x128xi1> to vector<1x128xi8>
    %c0_31 = arith.constant 0 : index
    %c0_32 = arith.constant 0 : index
    %c0_33 = arith.constant 0 : index
    %76 = vector.load %arg4[%c0_31, %c0_32, %c0_33] : memref<1x1x128xi8, #tpu.memory_space<vmem>>, vector<1x1x128xi8>
    %77 = vector.shape_cast %76 : vector<1x1x128xi8> to vector<1x128xi8>
    %78 = vector.shape_cast %75 : vector<1x128xi8> to vector<1x1x128xi8>
    tpu.vector_store %arg4[%c0_31, %c0_32, %c0_33], %78 {strides = array<i32>} : memref<1x1x128xi8, #tpu.memory_space<vmem>>, vector<1x1x128xi8>,
    return
  }
  func.func @transform_0(%arg0: i32, %arg1: i32) -> (i32, i32, i32) {
    %c0_i32 = arith.constant 0 : i32
    %c0_i32_0 = arith.constant 0 : i32
    return %arg0, %c0_i32, %arg1 : i32, i32, i32
  }
  func.func @transform_1(%arg0: i32, %arg1: i32) -> (i32, i32, i32) {
    %c0_i32 = arith.constant 0 : i32
    %c0_i32_0 = arith.constant 0 : i32
    return %arg0, %c0_i32, %arg1 : i32, i32, i32
  }
  func.func @transform_2(%arg0: i32, %arg1: i32) -> (i32, i32, i32) {
    %c0_i32 = arith.constant 0 : i32
    %c0_i32_0 = arith.constant 0 : i32
    return %arg0, %c0_i32, %arg1 : i32, i32, i32
  }
}

</mosaic_0001>

<llo_original>
// kernel: tpu_custom_call.1
$region0: #{tpu_custom_call.1}
  #allocation0 [shape = 'u32[]', space=smem, size = 0x4, offset = 0x4, fixed_abs, tag = 'smem constant byte address 0x4 - core index']
  #allocation1 [shape = 'u32[144,128]{1,0:T(1,128)}', space=vmem, size = 0x12000, scoped, tag = 'internal scratch']
  %s0 = inlined_call_operand.vmem [shape: f32[2,9,256], index: 0, kind: input, shape index: {}]
  %s1 = inlined_call_operand.hbm [shape: f32[2,8,256], index: 1, kind: output, shape index: {0}]
  %s2 = inlined_call_operand.vmem [shape: u8[2,1,256], index: 2, kind: output, shape index: {1}]
  %3 = xla_tuple %s1, %s2
  %s4 = sld [smem:[#allocation0]]
  $region83: #{tpu_custom_call.1} parent=0
    _
  %s6 = ssub.s32 1, %s4
  %s7 = scalar_select 0, %s6, %s4
  $region1: #{tpu_custom_call.1} parent=0
    #allocation2 [shape = 'u8[16384]{0}', space=vmem, size = 0x4000, scoped, tag = 'input window, operand 0']
    #allocation3 [shape = 'u8[8192]{0}', space=vmem, size = 0x2000, scoped, tag = 'output window, operand 0']
    #allocation4 [shape = 's32[2]{0}', space=sflag, size = 0x8, scoped, tag = 'scoped memory for tpu_custom_call.1']
    %8 = vsyncpa [#allocation4], 0
    %s9 = scalar_lea.sflag [#allocation4], 1
    %10 = vsyncpa %s9, 0
    loop: start=0, step=1, limit=6
    $region2: #{tpu_custom_call.1} parent=1 // loop_pre_header
      _
    $region3: #{tpu_custom_call.1} parent=1 // loop_header
      %s12 = sphi 0, %s16
      %p13 = scmp.ge.s32.totalorder %s12, 6
      %s19 = sphi 0, %s31
      %s20 = sphi 0, %s27
      %s21 = sphi 0, %s19
      %s22 = sphi 0, %s20
      %s23 = sphi 0, %s21
      %s24 = sphi 0, %s22
      %s36 = sphi 0, %s38
      %s39 = sphi 0, %s36
      %s40 = sphi 0, %s39
      %s56 = sphi 0, %s40
      %s64 = sphi 0, %s66
      %s67 = sphi 0, %s64
      %s68 = sphi 0, %s67
      %s84 = sphi 0, %s68
      %s92 = sphi 0, %s94
      %s95 = sphi 0, %s92
      %s96 = sphi 0, %s95
      %s112 = sphi 0, %s96
    $region4: #{tpu_custom_call.1} parent=1 // loop_header_branch
      %15 = sbr.rel (%p13) target = $region8
    $region5: #{tpu_custom_call.1} parent=1 // loop_body
      %s17 = ssub.s32 %s12, 1
      %s18 = ssub.s32 %s12, 2
      %s25 = sadd.s32 1, %s20
      %p26 = scmp.ge.s32.totalorder %s25, 2
      %s27 = scalar_select %p26, 0, %s25
      %s28 = sadd.s32 1, %s19
      %s29 = scalar_select %p26, %s28, %s19
      %p30 = scmp.ge.s32.totalorder %s29, 2
      %s31 = scalar_select %p30, 0, %s29
      %s32 = ssub.s32 %s19, %s31
      %s33 = ssub.s32 %s20, %s27
      %s34 = sor.u32 %s32, %s33
      %p35 = scmp.eq.s32.totalorder %s34, 0
      %s37 = sadd.s32 %s36, 1
      %s38 = scalar_select %p35, %s36, %s37
      %p41 = pneg %p35
      %p42 = scmp.eq.s32.totalorder %s12, 3
      %p43 = por %p41, %p42
      %p44 = scmp.ne.s32.totalorder %s36, %s39
      %p45 = scmp.eq.s32.totalorder %s12, 0
      %p46 = por %p44, %p45
      %p47 = scmp.ne.s32.totalorder %s36, %s39
      %p48 = scmp.eq.s32.totalorder %s17, 3
      %p49 = por %p47, %p48
      %p50 = scmp.ne.s32.totalorder %s39, %s40
      %p51 = scmp.eq.s32.totalorder %s17, 0
      %p52 = por %p50, %p51
      %p53 = scmp.ne.s32.totalorder %s39, %s40
      %p54 = scmp.eq.s32.totalorder %s18, 3
      %p55 = por %p53, %p54
      %p57 = scmp.ne.s32.totalorder %s40, %s56
      %p58 = scmp.eq.s32.totalorder %s18, 0
      %p59 = por %p57, %p58
      %s60 = ssub.s32 %s19, %s31
      %s61 = ssub.s32 %s20, %s27
      %s62 = sor.u32 %s60, %s61
      %p63 = scmp.eq.s32.totalorder %s62, 0
      %s65 = sadd.s32 %s64, 1
      %s66 = scalar_select %p63, %s64, %s65
      %p69 = pneg %p63
      %p70 = scmp.eq.s32.totalorder %s12, 3
      %p71 = por %p69, %p70
      %p72 = scmp.ne.s32.totalorder %s64, %s67
      %p73 = scmp.eq.s32.totalorder %s12, 0
      %p74 = por %p72, %p73
      %p75 = scmp.ne.s32.totalorder %s64, %s67
      %p76 = scmp.eq.s32.totalorder %s17, 3
      %p77 = por %p75, %p76
      %p78 = scmp.ne.s32.totalorder %s67, %s68
      %p79 = scmp.eq.s32.totalorder %s17, 0
      %p80 = por %p78, %p79
      %p81 = scmp.ne.s32.totalorder %s67, %s68
      %p82 = scmp.eq.s32.totalorder %s18, 3
      %p83 = por %p81, %p82
      %p85 = scmp.ne.s32.totalorder %s68, %s84
      %p86 = scmp.eq.s32.totalorder %s18, 0
      %p87 = por %p85, %p86
      %s88 = ssub.s32 %s19, %s31
      %s89 = ssub.s32 %s20, %s27
      %s90 = sor.u32 %s88, %s89
      %p91 = scmp.eq.s32.totalorder %s90, 0
      %s93 = sadd.s32 %s92, 1
      %s94 = scalar_select %p91, %s92, %s93
      %p97 = pneg %p91
      %p98 = scmp.eq.s32.totalorder %s12, 3
      %p99 = por %p97, %p98
      %p100 = scmp.ne.s32.totalorder %s92, %s95
      %p101 = scmp.eq.s32.totalorder %s12, 0
      %p102 = por %p100, %p101
      %p103 = scmp.ne.s32.totalorder %s92, %s95
      %p104 = scmp.eq.s32.totalorder %s17, 3
      %p105 = por %p103, %p104
      %p106 = scmp.ne.s32.totalorder %s95, %s96
      %p107 = scmp.eq.s32.totalorder %s17, 0
      %p108 = por %p106, %p107
      %p109 = scmp.ne.s32.totalorder %s95, %s96
      %p110 = scmp.eq.s32.totalorder %s18, 3
      %p111 = por %p109, %p110
      %p113 = scmp.ne.s32.totalorder %s96, %s112
      %p114 = scmp.eq.s32.totalorder %s18, 0
      %p115 = por %p113, %p114
      %p116 = scmp.le.s32.totalorder 1, %s12
      %p117 = scmp.lt.s32.totalorder %s12, 5
      %p118 = pnand %p116, %p117
      %p119 = pneg %p118
      // Predicated region
      $region9: #{tpu_custom_call.1} parent=5 // pred_check
        _
      $region10: #{tpu_custom_call.1} parent=5 // pred_check_branch
        %121 = sbr.rel (%p118) target = $region12
      $region11: #{tpu_custom_call.1} parent=5 // pred_region
        %s122 = ssub.s32 %s12, 1
      $region12: #{tpu_custom_call.1} parent=5 // pred_fallthru
        _
      %p123 = scmp.lt.s32.totalorder %s12, 4
      // Predicated region
      $region13: #{tpu_custom_call.1} parent=5 // pred_check
        %p124 = pneg %p123
      $region14: #{tpu_custom_call.1} parent=5 // pred_check_branch
        %126 = sbr.rel (%p124) target = $region16
      $region15: #{tpu_custom_call.1} parent=5 // pred_region
        // Predicated region
        $region17: #{tpu_custom_call.1} parent=15 // pred_check
          %p127 = pneg %p46
        $region18: #{tpu_custom_call.1} parent=15 // pred_check_branch
          %129 = sbr.rel (%p127) target = $region20
        $region19: #{tpu_custom_call.1} parent=15 // pred_region
          %s130 = sand.u32 %s36, 1
          %s131 = sand.u32 %s36, 1
          %s132 = smul.addr %s131, 16
          %s133 = scalar_lea.vmem [#allocation2], %s132
          %s134 = smul.addr %s19, 4
          %s135 = sadd.s32 %s20, %s134
          %s136 = smul.addr %s135, 8
          %s137 = scalar_lea.vmem %s0, %s136
          // Predicated region
          $region21: #{tpu_custom_call.1} parent=19 // pred_check
            _
          $region22: #{tpu_custom_call.1} parent=19 // pred_check_branch
            %139 = sbr.rel (0) target = $region24
          $region23: #{tpu_custom_call.1} parent=19 // pred_region
            // Predicated region
            $region25: #{tpu_custom_call.1} parent=23 // pred_check
              _
            $region26: #{tpu_custom_call.1} parent=23 // pred_check_branch
              %141 = sbr.rel (0) target = $region28
            $region27: #{tpu_custom_call.1} parent=23 // pred_region
              // Predicated region
              $region40: #{tpu_custom_call.1} parent=27 // pred_check
                _
              $region41: #{tpu_custom_call.1} parent=27 // pred_check_branch
                %159 = sbr.rel (0) target = $region43
              $region42: #{tpu_custom_call.1} parent=27 // pred_region
                loop: start=0, step=1, limit=1
                $region44: #{tpu_custom_call.1} parent=42 // loop_pre_header
                  _
                $region45: #{tpu_custom_call.1} parent=42 // loop_header
                  %s161 = sphi 0, %s165
                  %p162 = scmp.ge.s32.totalorder %s161, 1
                  %s166 = sphi %s137, %s137
                  %s167 = sphi %s133, %s133
                $region46: #{tpu_custom_call.1} parent=42 // loop_header_branch
                  %164 = sbr.rel (%p162) target = $region50
                $region47: #{tpu_custom_call.1} parent=42 // loop_body
                  %v168 = vld [vmem:[%s166] sm:$0xff]
                  %169 = vst [vmem:[%s167] sm:$0xff] %v168
                  %v170 = vld [vmem:[%s166 + $0x10] sm:$0xff]
                  %171 = vst [vmem:[%s167 + $0x8] sm:$0xff] %v170
                $region48: #{tpu_custom_call.1} parent=42 // loop_footer
                  %s165 = sadd.s32 1, %s161
                $region49: #{tpu_custom_call.1} parent=42 // loop_footer_branch
                  %160 = sbr.rel target = $region45
                $region50: #{tpu_custom_call.1} parent=42 // loop_exit
                  _
              $region43: #{tpu_custom_call.1} parent=27 // pred_fallthru
                _
              // Predicated region
              $region51: #{tpu_custom_call.1} parent=27 // pred_check
                _
              $region52: #{tpu_custom_call.1} parent=27 // pred_check_branch
                %173 = sbr.rel target = $region54
              $region53: #{tpu_custom_call.1} parent=27 // pred_region
                _
              $region54: #{tpu_custom_call.1} parent=27 // pred_fallthru
                _
            $region28: #{tpu_custom_call.1} parent=23 // pred_fallthru
              _
            // Predicated region
            $region29: #{tpu_custom_call.1} parent=23 // pred_check
              _
            $region30: #{tpu_custom_call.1} parent=23 // pred_check_branch
              %143 = sbr.rel target = $region32
            $region31: #{tpu_custom_call.1} parent=23 // pred_region
              %s145 = ssub.s32 256, 1
              loop: start=0, step=1, limit=1
              $region33: #{tpu_custom_call.1} parent=31 // loop_pre_header
                _
              $region34: #{tpu_custom_call.1} parent=31 // loop_header
                %s147 = sphi 0, %s151
                %p148 = scmp.ge.s32.totalorder %s147, 1
                %s152 = sphi %s137, %s137
                %s153 = sphi %s133, %s133
              $region35: #{tpu_custom_call.1} parent=31 // loop_header_branch
                %150 = sbr.rel (%p148) target = $region39
              $region36: #{tpu_custom_call.1} parent=31 // loop_body
                %v154 = vld [vmem:[%s152] sm:%s145]
                %155 = vst [vmem:[%s153] sm:%s145] %v154
                %v156 = vld [vmem:[%s152 + $0x10] sm:%s145]
                %157 = vst [vmem:[%s153 + $0x8] sm:%s145] %v156
              $region37: #{tpu_custom_call.1} parent=31 // loop_footer
                %s151 = sadd.s32 1, %s147
              $region38: #{tpu_custom_call.1} parent=31 // loop_footer_branch
                %146 = sbr.rel target = $region34
              $region39: #{tpu_custom_call.1} parent=31 // loop_exit
                _
            $region32: #{tpu_custom_call.1} parent=23 // pred_fallthru
              _
          $region24: #{tpu_custom_call.1} parent=19 // pred_fallthru
            _
          %174 = vnop
        $region20: #{tpu_custom_call.1} parent=15 // pred_fallthru
          _
      $region16: #{tpu_custom_call.1} parent=5 // pred_fallthru
        _
      %p175 = scmp.le.s32.totalorder 1, %s12
      %p176 = scmp.lt.s32.totalorder %s12, 5
      %p177 = pnand %p175, %p176
      %p178 = pneg %p177
      // Predicated region
      $region55: #{tpu_custom_call.1} parent=5 // pred_check
        _
      $region56: #{tpu_custom_call.1} parent=5 // pred_check_branch
        %180 = sbr.rel (%p177) target = $region58
      $region57: #{tpu_custom_call.1} parent=5 // pred_region
        %s181 = ssub.s32 %s12, 1
        %s182 = sand.u32 %s39, 1
        %s183 = sand.u32 %s39, 1
        %s184 = smul.addr %s183, 16
        %s185 = scalar_lea.vmem [#allocation2], %s184
        // Predicated region
        $region59: #{tpu_custom_call.1} parent=57 // pred_check
          %p186 = pneg %p52
        $region60: #{tpu_custom_call.1} parent=57 // pred_check_branch
          %188 = sbr.rel (%p186) target = $region62
        $region61: #{tpu_custom_call.1} parent=57 // pred_region
          _
        $region62: #{tpu_custom_call.1} parent=57 // pred_fallthru
          _
        %s189 = sand.u32 %s39, 1
        %s190 = sand.u32 %s39, 1
        %s191 = smul.addr %s190, 16
        %s192 = scalar_lea.vmem [#allocation2], %s191
        %p193 = pneg %p52
        %p194 = pneg %p49
        %p195 = pneg %p80
        %p196 = pneg %p77
        %s197 = sand.u32 %s67, 1
        %s198 = scalar_lea.sflag [#allocation4], %s197
        %s199 = sand.u32 %s67, 1
        %s200 = smul.addr %s199, 8
        %s201 = scalar_lea.vmem [#allocation3], %s200
        %p202 = pneg %p108
        %p203 = pneg %p105
        %p204 = scmp.lt.s32.totalorder %s21, 1
        %s205 = scalar_select %p204, %s21, 1
        %p206 = scmp.lt.s32.totalorder %s22, 1
        %s207 = scalar_select %p206, %s22, 1
        %s208 = smul.addr %s205, 2
        %s209 = sadd.s32 %s207, %s208
        %s210 = scalar_lea.vmem %s2, %s209
        %p211 = scmp.lt.s32.totalorder %s21, 1
        %s212 = scalar_select %p211, %s21, 1
        %p213 = scmp.lt.s32.totalorder %s22, 1
        %s214 = scalar_select %p213, %s22, 1
        %s215 = smul.addr %s212, 2
        %s216 = sadd.s32 %s214, %s215
        %s217 = scalar_lea.vmem %s2, %s216
        %v220 = vld [vmem:[%s185] sm:$0xf]
        %v221 = vxor.u32 %v220, 2147483648
        %v222 = vmul.f32 %v221, 1.442695
        %v223 = vpow.pop %v222
        %v224 = vadd.f32 %v223, 1.0
        %v225 = vrcp.pop %v224
        %v226 = vmul.f32 1.0, %v225
        %v227 = vld [vmem:[%s185 + $0x4] sm:$0x7]
        %v228 = vmul.f32 %v227, 1.442695
        %v229 = vpow.pop %v228
        %v230 = vld [vmem:[%s185 + $0x7] sm:$0x1]
        %v231 = vtanh.pop %v230
        %v232 = vld [vmem:[%s185 + $0x8] sm:$0x1]
        %v233 = vtanh.pop %v232
        %s234 = smul.u32 %s22, 128
        %s235 = scvt.s32.f32 %s234
        %v236 = vlaneseq
        %v237 = vshrl.u32 %v236, 7
        %v238 = vlaneseq
        %v239 = vand.u32 %v238, 127
        %v240 = vcvt.s32.f32 %v239
        %v241 = vstv %s235
        %v242 = vadd.f32 %v240, %v241
        %v243 = vadd.f32 %v242, 0.5
        %v244 = vmul.f32 %v243, 0.0625
        %v245 = vfloor.f32 %v244
        %v246 = vmul.f32 %v245, 16.0
        %v247 = vsub.f32 %v242, %v246
        %vm248 = vcmp.eq.s32.totalorder %v237, 1
        %vm249 = vcmp.eq.s32.totalorder %v237, 2
        %v250 = vadd.f32 %v247, -40.0
        %vm251 = vcmp.eq.s32.totalorder %v237, 3
        %v252 = vsel %vm251, -2.73, 0.0
        %v253 = vsel %vm249, %v250, %v252
        %v254 = vsel %vm248, %v245, %v253
        %v255 = vsel %vm251, 4.0, 1.0
        %vm256 = vcmp.eq.s32.totalorder %v237, 0
        %v257 = vsel %vm248, 1.63, 1.53
        %v258 = vsel %vm256, 3.88, %v257
        %v259 = vmul.f32 %v226, %v255
        %v260 = vadd.f32 %v259, %v254
        %261 = vst [vmem:[%s201] sm:$0xf] %v260
        %v262 = vmul.f32 %v229, %v258
        %263 = vst [vmem:[%s201 + $0x4] sm:$0x7] %v262
        %v264 = vand.u32 2147483647, %v233
        %v265 = vand.u32 2147483647, %v231
        %v266 = vmin.f32 %v264, %v265
        %v267 = vmax.f32 %v264, %v265
        %v268 = vrcp.pop %v267
        %v269 = vmul.f32 %v266, %v268
        %v270 = vmul.f32 %v269, %v269
        %v271 = vmul.f32 0.002785687, %v270
        %v272 = vadd.f32 %v271, -0.015866
        %v273 = vmul.f32 %v272, %v270
        %v274 = vadd.f32 %v273, 0.04247222
        %v275 = vmul.f32 %v274, %v270
        %v276 = vadd.f32 %v275, -0.074975304
        %v277 = vmul.f32 %v276, %v270
        %v278 = vadd.f32 %v277, 0.1064488
        %v279 = vmul.f32 %v278, %v270
        %v280 = vadd.f32 %v279, -0.14207031
        %v281 = vmul.f32 %v280, %v270
        %v282 = vadd.f32 %v281, 0.19993454
        %v283 = vmul.f32 %v282, %v270
        %v284 = vadd.f32 %v283, -0.33333147
        %v285 = vmul.f32 %v284, %v270
        %v286 = vmul.f32 %v285, %v269
        %v287 = vadd.f32 %v286, %v269
        %vm288 = vcmp.gt.f32.partialorder %v265, %v264
        %v289 = vsub.f32 1.5707964, %v287
        %v290 = vsel %vm288, %v289, %v287
        %vm291 = vcmp.lt.f32.partialorder %v233, 0.0
        %v292 = vsub.f32 3.1415927, %v290
        %v293 = vsel %vm291, %v292, %v290
        %vm294 = vcmp.lt.s32.totalorder %v233, 0
        %v295 = vsel %vm294, 3.1415927, 0.0
        %vm296 = vcmp.eq.f32.partialorder %v231, 0.0
        %v297 = vsel %vm296, %v295, %v293
        %vm298 = vcmp.ne.f32.partialorder %v233, %v233
        %vm299 = vcmp.ne.f32.partialorder %v231, %v231
        %vm300 = vmor %vm298, %vm299
        %v301 = vsel %vm300, nan, %v297
        %vm302 = vcmp.lt.f32.partialorder %v233, 0.0
        %v303 = vsel %vm302, 2.3561945, 0.7853982
        %vm304 = vcmp.eq.s32.totalorder %v264, inf
        %vm305 = vcmp.eq.s32.totalorder %v265, inf
        %vm306 = vmand %vm304, %vm305
        %v307 = vsel %vm306, %v303, %v301
        %v308 = vand.u32 2147483647, %v307
        %v309 = vand.u32 %v231, 2147483648
        %v310 = vor.u32 %v308, %v309
        %311 = vst [vmem:[%s201 + $0x7] sm:$0x1] %v310
        %vm312 = vcmp.gt.f32.partialorder %v226, 0.5
        %vm313 = vmpackc.low %vm312, %vm312
        %vm314 = vmpackc.even %vm313, %vm313
        %v315 = vsel %vm314, 16843009, 0
        %vm316 = vcmask 1040384
        %vm317 = vsmask.f32 0
        %vm318 = vmand %vm316, %vm317
        %v319 = vld [vmem:[%s217] sm:$0x1]
        %v320 = vsel %vm318, %v315, %v319
        %321 = vst [vmem:[%s217] sm:$0x1] %v320
        %s322 = sand.u32 %s67, 1
        %s323 = scalar_lea.sflag [#allocation4], %s322
        %s324 = sand.u32 %s67, 1
        %s325 = smul.addr %s324, 8
        %s326 = scalar_lea.vmem [#allocation3], %s325
        %p327 = scmp.lt.s32.totalorder %s21, 1
        %s328 = scalar_select %p327, %s21, 1
        %p329 = scmp.lt.s32.totalorder %s22, 1
        %s330 = scalar_select %p329, %s22, 1
        %s331 = smul.addr %s328, 2
        %s332 = sadd.s32 %s330, %s331
        %s333 = scalar_lea.vmem %s2, %s332
        // Predicated region
        $region63: #{tpu_custom_call.1} parent=57 // pred_check
          %p334 = pneg %p77
        $region64: #{tpu_custom_call.1} parent=57 // pred_check_branch
          %336 = sbr.rel (%p334) target = $region66
        $region65: #{tpu_custom_call.1} parent=57 // pred_region
          %s338 = ssub.s32 128, 128
          %339 = vsyncadd %s323, %s338
          %s340 = smul.addr %s21, 2
          %s341 = sadd.s32 %s22, %s340
          %s342 = smul.addr %s341, 128
          %s343 = scalar_lea.hbm %s1, %s342
          %s345 = sshll.u32 %s326, 4
          %s346 = int_to_ptr.vmem [resolvable:$true] %s345
          %348 = dma.vmem_to_hbm [thread:$0]  %s346, 128, %s343, %s323
        $region66: #{tpu_custom_call.1} parent=57 // pred_fallthru
          _
        // Predicated region
        $region67: #{tpu_custom_call.1} parent=57 // pred_check
          %p349 = pneg %p105
        $region68: #{tpu_custom_call.1} parent=57 // pred_check_branch
          %351 = sbr.rel (%p349) target = $region70
        $region69: #{tpu_custom_call.1} parent=57 // pred_region
          _
        $region70: #{tpu_custom_call.1} parent=57 // pred_fallthru
          _
      $region58: #{tpu_custom_call.1} parent=5 // pred_fallthru
        _
      %p352 = scmp.le.s32.totalorder 2, %s12
      // Predicated region
      $region71: #{tpu_custom_call.1} parent=5 // pred_check
        %p353 = pneg %p352
      $region72: #{tpu_custom_call.1} parent=5 // pred_check_branch
        %355 = sbr.rel (%p353) target = $region74
      $region73: #{tpu_custom_call.1} parent=5 // pred_region
        %s356 = ssub.s32 %s12, 2
        // Predicated region
        $region75: #{tpu_custom_call.1} parent=73 // pred_check
          %p357 = pneg %p83
        $region76: #{tpu_custom_call.1} parent=73 // pred_check_branch
          %359 = sbr.rel (%p357) target = $region78
        $region77: #{tpu_custom_call.1} parent=73 // pred_region
          %s360 = sand.u32 %s68, 1
          %s361 = scalar_lea.sflag [#allocation4], %s360
          %s362 = sand.u32 %s68, 1
          %s363 = smul.addr %s362, 8
          %s364 = scalar_lea.vmem [#allocation3], %s363
          %365 = dma.done %s361, 128
        $region78: #{tpu_custom_call.1} parent=73 // pred_fallthru
          _
        // Predicated region
        $region79: #{tpu_custom_call.1} parent=73 // pred_check
          %p366 = pneg %p111
        $region80: #{tpu_custom_call.1} parent=73 // pred_check_branch
          %368 = sbr.rel (%p366) target = $region82
        $region81: #{tpu_custom_call.1} parent=73 // pred_region
          %p369 = scmp.lt.s32.totalorder %s23, 1
          %s370 = scalar_select %p369, %s23, 1
          %p371 = scmp.lt.s32.totalorder %s24, 1
          %s372 = scalar_select %p371, %s24, 1
          %s373 = smul.addr %s370, 2
          %s374 = sadd.s32 %s372, %s373
          %s375 = scalar_lea.vmem %s2, %s374
        $region82: #{tpu_custom_call.1} parent=73 // pred_fallthru
          _
      $region74: #{tpu_custom_call.1} parent=5 // pred_fallthru
        _
    $region6: #{tpu_custom_call.1} parent=1 // loop_footer
      %s16 = sadd.s32 1, %s12
    $region7: #{tpu_custom_call.1} parent=1 // loop_footer_branch
      %11 = sbr.rel target = $region3
    $region8: #{tpu_custom_call.1} parent=1 // loop_exit
      _
    %376 = vsyncpa [#allocation4], 1
    %s377 = scalar_lea.sflag [#allocation4], 1
    %378 = vsyncpa %s377, 1

</llo_original>
